<compile_context>
chip_gen: v7x
topology: tpu7x:2x2x1
jax: 0.10.0
libtpu: 0.0.40
codegen_flags: <defaults>
</compile_context>

<pallas_src>
import functools

import jax
import jax.numpy as jnp
import numpy as np
from jax.experimental import pallas as pl
from jax.experimental.pallas import tpu as pltpu

# ----------------------------- config --------------------------------------
NUM_EXPERTS = 3          # MoEOptions.num_experts
TOP_K = 2                # MoEOptions.num_experts_per_tok
LORA_RANK = 5            # MoEOptions.lora_experts_rank
D = 32                   # in_features == out_features (results = zeros_like(inputs))
N_TOKENS = 16            # batch of tokens


# ----------------------------- kernel ---------------------------------------
def moe_kernel(xf_ref, wg_ref, aaug_ref, sel_ref, base_ref, m2_ref, bias_ref,
               of_ref, *, fold):
    """One (lane-folded) token tile: gate -> top-k -> softmax -> fused experts+base."""
    d = wg_ref.shape[0]
    num_e = wg_ref.shape[1]
    rows = xf_ref.shape[0]                           # folded rows per tile

    # ---- unfold (rows, fold*d) -> (fold*rows, d); any within-tile token
    #      permutation is fine, we invert it on the store side. ----
    xf = xf_ref[...]
    if fold > 1:
        x = jnp.concatenate([xf[:, j * d:(j + 1) * d] for j in range(fold)], axis=0)
    else:
        x = xf                                       # (TM, d) f32

    # ---- gate: logits = x @ Wg  (f32 so top-k selection stays exact) ----
    logits = jnp.dot(x, wg_ref[...], preferred_element_type=jnp.float32)  # (TM, E)

    # ---- top-k selection mask (iterative max-and-mask, k is static) ----
    neg = jnp.float32(-1e30)
    lane_e = jax.lax.broadcasted_iota(jnp.int32, logits.shape, 1)
    work = logits
    sel_mask = jnp.zeros(logits.shape, dtype=jnp.bool_)
    for _ in range(TOP_K):
        m = jnp.max(work, axis=-1, keepdims=True)
        is_max = work == m
        # first occurrence (lowest index) on ties, matching lax.top_k
        first_idx = jnp.min(jnp.where(is_max, lane_e, num_e), axis=-1, keepdims=True)
        first = lane_e == first_idx
        sel_mask = jnp.logical_or(sel_mask, first)
        work = jnp.where(first, neg, work)

    # ---- softmax over the selected (top-k) logits, in f32; approx rcp -> EUP ----
    masked = jnp.where(sel_mask, logits, neg)
    mmax = jnp.max(masked, axis=-1, keepdims=True)
    ex = jnp.where(sel_mask, jnp.exp(masked - mmax), 0.0)
    wts = ex * pl.reciprocal(jnp.sum(ex, axis=-1, keepdims=True), approx=True)  # (TM, E)

    # ---- per-column routing scale via selector matmul (MXU, not VPU):
    #      LoRA columns of expert e get wts[:, e]; identity (base W) columns get 1. ----
    scale = jnp.dot(wts, sel_ref[...], preferred_element_type=jnp.float32) + base_ref[...]

    # ---- fused expert path (bf16 operands, f32 accumulate):
    #      hx  = x @ [A0^T | A1^T | A2^T | I_D]
    #      out = (scale * hx) @ [B0^T ; B1^T ; B2^T ; W^T] + b ----
    xb = x.astype(jnp.bfloat16)
    hx = jnp.dot(xb, aaug_ref[...], preferred_element_type=jnp.float32)   # (TM, E*r+d)
    hx = (hx * scale).astype(jnp.bfloat16)
    out = jnp.dot(hx, m2_ref[...], preferred_element_type=jnp.float32) + bias_ref[...]
    out = out.astype(of_ref.dtype)                                        # (TM, d)

    # ---- refold (fold*rows, d) -> (rows, fold*d): lane-dense 128-wide store ----
    if fold > 1:
        of_ref[...] = jnp.concatenate(
            [out[j * rows:(j + 1) * rows, :] for j in range(fold)], axis=1)
    else:
        of_ref[...] = out


# ----------------------------- parameter prep (one-time) ---------------------
def prepare_moe_params(gate_w, lora_a, lora_b, base_w, base_b):
    """Hoisted out of the forward: transpose PyTorch (out, in) weights to (in, out),
    pre-concatenate the fused operands, pre-cast matmul weights to bf16, and build
    the constant routing-selector matrices.  Call once at load time."""
    e, r, d = lora_a.shape
    kdim = e * r + d

    wg_t = jnp.asarray(gate_w, jnp.float32).T                              # (D, E) f32
    a_cat = jnp.concatenate([jnp.asarray(lora_a[i]).T for i in range(e)],
                            axis=1)                                        # (D, E*r)
    a_aug = jnp.concatenate([a_cat, jnp.eye(d, dtype=a_cat.dtype)],
                            axis=1).astype(jnp.bfloat16)                   # (D, E*r+D)
    b_stack = jnp.concatenate([jnp.asarray(lora_b[i]).T for i in range(e)],
                              axis=0)                                      # (E*r, D)
    m2 = jnp.concatenate([b_stack, jnp.asarray(base_w).T],
                         axis=0).astype(jnp.bfloat16)                      # (E*r+D, D)

    # selector: column j (LoRA col of expert i) picks wts[:, i]; identity cols get +1
    sel = np.zeros((e, kdim), np.float32)
    for i in range(e):
        sel[i, i * r:(i + 1) * r] = 1.0
    base_row = np.zeros((1, kdim), np.float32)
    base_row[0, e * r:] = 1.0

    bias2d = jnp.asarray(base_b, jnp.float32).reshape(1, d)                # (1, D)
    return wg_t, a_aug, jnp.asarray(sel), jnp.asarray(base_row), m2, bias2d


# ----------------------------- wrapper ---------------------------------------
@jax.jit
def moe_forward(x, wg_t, a_aug, sel, base_row, m2, bias2d):
    """x: (N, D). Weights already prepared by prepare_moe_params."""
    n, d = x.shape
    e = wg_t.shape[1]
    kdim = a_aug.shape[1]

    # Lane folding: view tokens as (rows, fold*d) with fold*d == 128 so loads and
    # stores are 128-lane dense.  The reshape is a free contiguous view (bitcast).
    fold = 1
    if d < 128 and 128 % d == 0 and n % (128 // d) == 0:
        fold = 128 // d
    rows = n // fold
    lane = fold * d
    xf = x.reshape(rows, lane)

    # Folded-row tile: large tiles (per-grid-step overhead ~0.35us), but keep
    # >= 2 grid steps when the batch is big enough (v7x has 2 TensorCores).
    if rows < 8:
        tm = rows                                    # full-dim block (allowed)
    else:
        tm = min(rows, max(8, 1024 // fold))         # ~1024 tokens / tile
        if rows >= 16:
            tm = min(tm, -(-rows // 2))              # at least 2 grid steps
        tm = max(8, (tm // 8) * 8)                   # sublane multiple
    n_steps = pl.cdiv(rows, tm)                      # ragged last block is masked

    # Explicit VMEM budget from the actual buffers (+ headroom, under v7x 64 MiB).
    io_bytes = 2 * 2 * tm * lane * 4                             # x + out, 2x buffered
    w_bytes = 2 * (d * e * 4 + d * kdim * 2 + e * kdim * 4 +
                   kdim * 4 + kdim * d * 2 + d * 4)              # weights, 2x buffered
    vmem_limit = int(min(max(io_bytes + w_bytes + (8 << 20), 16 << 20), 48 << 20))

    out_f = pl.pallas_call(
        functools.partial(moe_kernel, fold=fold),
        out_shape=jax.ShapeDtypeStruct((rows, lane), x.dtype),
        grid_spec=pltpu.PrefetchScalarGridSpec(
            num_scalar_prefetch=0,
            grid=(n_steps,),
            in_specs=[
                pl.BlockSpec((tm, lane), lambda i: (i, 0)),      # x (lane-folded)
                pl.BlockSpec((d, e), lambda i: (0, 0)),          # gate weight (D, E)
                pl.BlockSpec((d, kdim), lambda i: (0, 0)),       # [A^T | I]  bf16
                pl.BlockSpec((e, kdim), lambda i: (0, 0)),       # routing selector
                pl.BlockSpec((1, kdim), lambda i: (0, 0)),       # base-column mask
                pl.BlockSpec((kdim, d), lambda i: (0, 0)),       # [B^T ; W^T] bf16
                pl.BlockSpec((1, d), lambda i: (0, 0)),          # base bias
            ],
            out_specs=pl.BlockSpec((tm, lane), lambda i: (i, 0)),
        ),
        compiler_params=pltpu.CompilerParams(
            dimension_semantics=("parallel",),
            vmem_limit_bytes=vmem_limit),
    )(xf, wg_t, a_aug, sel, base_row, m2, bias2d)
    return out_f.reshape(n, d)


# ----------------------------- pure-JAX reference ----------------------------
def moe_reference(x, gate_w, lora_a, lora_b, base_w, base_b):
    logits = x @ gate_w.T                                     # (N, E)
    vals, idxs = jax.lax.top_k(logits, TOP_K)                 # (N, k)
    w = jax.nn.softmax(vals.astype(jnp.float32), axis=1).astype(x.dtype)
    out = jnp.zeros_like(x)
    for e in range(NUM_EXPERTS):
        expert_out = (x @ lora_a[e].T) @ lora_b[e].T
        we = jnp.sum(jnp.where(idxs == e, w, 0.0), axis=1, keepdims=True)
        out = out + we * expert_out
    out = out + x @ base_w.T + base_b[None, :]
    return out


# ----------------------------- main ------------------------------------------
if __name__ == "__main__":
    key = jax.random.PRNGKey(0)
    kx, kg, ka, kb, kw, kbias = jax.random.split(key, 6)

    x = jax.random.normal(kx, (N_TOKENS, D), dtype=jnp.float32)

    # Deterministic synthetic parameters (PyTorch (out, in) convention).
    gate_w = jax.random.normal(kg, (NUM_EXPERTS, D), dtype=jnp.float32) * 0.1
    lora_a = jax.random.normal(ka, (NUM_EXPERTS, LORA_RANK, D), dtype=jnp.float32) * 0.1
    lora_b = jax.random.normal(kb, (NUM_EXPERTS, D, LORA_RANK), dtype=jnp.float32) * 0.1
    base_w = jax.random.normal(kw, (D, D), dtype=jnp.float32) * 0.1
    base_b = jax.random.normal(kbias, (D,), dtype=jnp.float32) * 0.1

    # One-time parameter preparation (transposes / concats / bf16 casts hoisted).
    wg_t, a_aug, sel, base_row, m2, bias2d = prepare_moe_params(
        gate_w, lora_a, lora_b, base_w, base_b)

    out = moe_forward(x, wg_t, a_aug, sel, base_row, m2, bias2d)
    out = jax.block_until_ready(out)

    ref = moe_reference(x, gate_w, lora_a, lora_b, base_w, base_b)
    # Tolerance relaxed for bf16 matmul operands + approx (EUP) reciprocal.
    np.testing.assert_allclose(np.asarray(out), np.asarray(ref), rtol=2e-2, atol=2e-2)

    print("KERNEL_OK")
</pallas_src>

<mosaic_0001>
module attributes {stable_mosaic.version = 11 : i64} {
  func.func @moe_kernel(%arg0: i32, %arg1: memref<4x128xf32, #tpu.memory_space<vmem>>, %arg2: memref<32x3xf32, #tpu.memory_space<vmem>>, %arg3: memref<32x47xbf16, #tpu.memory_space<vmem>>, %arg4: memref<3x47xf32, #tpu.memory_space<vmem>>, %arg5: memref<1x47xf32, #tpu.memory_space<vmem>>, %arg6: memref<47x32xbf16, #tpu.memory_space<vmem>>, %arg7: memref<1x32xf32, #tpu.memory_space<vmem>>, %arg8: memref<4x128xf32, #tpu.memory_space<vmem>>) attributes {dimension_semantics = [#tpu.dimension_semantics<parallel>], iteration_bounds = array<i64: 1>, scalar_prefetch = 0 : i64, scratch_operands = 0 : i64, tpu.core_type = #tpu.core_type<tc>, window_params = [{transform_indices = @transform_0, window_bounds = array<i64: 4, 128>}, {pipeline_mode = #tpu.pipeline_mode<synchronous>, transform_indices = @transform_1, window_bounds = array<i64: 32, 3>}, {pipeline_mode = #tpu.pipeline_mode<synchronous>, transform_indices = @transform_2, window_bounds = array<i64: 32, 47>}, {pipeline_mode = #tpu.pipeline_mode<synchronous>, transform_indices = @transform_3, window_bounds = array<i64: 3, 47>}, {pipeline_mode = #tpu.pipeline_mode<synchronous>, transform_indices = @transform_4, window_bounds = array<i64: 1, 47>}, {pipeline_mode = #tpu.pipeline_mode<synchronous>, transform_indices = @transform_5, window_bounds = array<i64: 47, 32>}, {pipeline_mode = #tpu.pipeline_mode<synchronous>, transform_indices = @transform_6, window_bounds = array<i64: 1, 32>}, {transform_indices = @transform_7, window_bounds = array<i64: 4, 128>}]} {
    %c0 = arith.constant 0 : index
    %c0_0 = arith.constant 0 : index
    %0 = vector.load %arg1[%c0, %c0_0] : memref<4x128xf32, #tpu.memory_space<vmem>>, vector<4x128xf32>
    %1 = vector.extract_strided_slice %0 {offsets = [0, 0], sizes = [4, 32], strides = [1, 1]} : vector<4x128xf32> to vector<4x32xf32>
    %2 = vector.extract_strided_slice %0 {offsets = [0, 32], sizes = [4, 32], strides = [1, 1]} : vector<4x128xf32> to vector<4x32xf32>
    %3 = vector.extract_strided_slice %0 {offsets = [0, 64], sizes = [4, 32], strides = [1, 1]} : vector<4x128xf32> to vector<4x32xf32>
    %4 = vector.extract_strided_slice %0 {offsets = [0, 96], sizes = [4, 32], strides = [1, 1]} : vector<4x128xf32> to vector<4x32xf32>
    %5 = tpu.concatenate %1, %2, %3, %4 in 0 : vector<4x32xf32>, vector<4x32xf32>, vector<4x32xf32>, vector<4x32xf32> -> vector<16x32xf32>
    %c0_1 = arith.constant 0 : index
    %c0_2 = arith.constant 0 : index
    %6 = vector.load %arg2[%c0_1, %c0_2] : memref<32x3xf32, #tpu.memory_space<vmem>>, vector<32x3xf32>
    %cst = arith.constant dense<0.000000e+00> : vector<16x3xf32>
    %7 = tpu.matmul %5, %6, %cst {dimension_numbers = #tpu.dot_dimension_numbers<[1], [0], [0], [1], [0, 0, 1, 1], [], []>} : vector<16x32xf32>, vector<32x3xf32>, vector<16x3xf32> -> vector<16x3xf32>
    %8 = tpu.iota {dimensions = array<i32: 1>} : vector<16x3xi32>
    %false = arith.constant false
    %9 = vector.broadcast %false : i1 to vector<16x3xi1>
    %cst_3 = arith.constant dense<0xFF800000> : vector<16xf32>
    %10 = vector.multi_reduction <maximumf>, %7, %cst_3 [1] : vector<16x3xf32> to vector<16xf32>
    %11 = vector.shape_cast %10 : vector<16xf32> to vector<16x1xf32>
    %12 = vector.broadcast %11 : vector<16x1xf32> to vector<16x3xf32>
    %13 = arith.cmpf oeq, %7, %12 : vector<16x3xf32>
    %c3_i32 = arith.constant 3 : i32
    %14 = vector.broadcast %c3_i32 : i32 to vector<16x3xi32>
    %15 = arith.select %13, %8, %14 : vector<16x3xi1>, vector<16x3xi32>
    %cst_4 = arith.constant dense<2147483647> : vector<16xi32>
    %16 = vector.multi_reduction <minsi>, %15, %cst_4 [1] : vector<16x3xi32> to vector<16xi32>
    %17 = vector.shape_cast %16 : vector<16xi32> to vector<16x1xi32>
    %18 = vector.broadcast %17 : vector<16x1xi32> to vector<16x3xi32>
    %19 = arith.cmpi eq, %8, %18 : vector<16x3xi32>
    %20 = arith.ori %9, %19 : vector<16x3xi1>
    %cst_5 = arith.constant -1.000000e+30 : f32
    %21 = vector.broadcast %cst_5 : f32 to vector<16x3xf32>
    %22 = arith.select %19, %21, %7 : vector<16x3xi1>, vector<16x3xf32>
    %cst_6 = arith.constant dense<0xFF800000> : vector<16xf32>
    %23 = vector.multi_reduction <maximumf>, %22, %cst_6 [1] : vector<16x3xf32> to vector<16xf32>
    %24 = vector.shape_cast %23 : vector<16xf32> to vector<16x1xf32>
    %25 = vector.broadcast %24 : vector<16x1xf32> to vector<16x3xf32>
    %26 = arith.cmpf oeq, %22, %25 : vector<16x3xf32>
    %c3_i32_7 = arith.constant 3 : i32
    %27 = vector.broadcast %c3_i32_7 : i32 to vector<16x3xi32>
    %28 = arith.select %26, %8, %27 : vector<16x3xi1>, vector<16x3xi32>
    %cst_8 = arith.constant dense<2147483647> : vector<16xi32>
    %29 = vector.multi_reduction <minsi>, %28, %cst_8 [1] : vector<16x3xi32> to vector<16xi32>
    %30 = vector.shape_cast %29 : vector<16xi32> to vector<16x1xi32>
    %31 = vector.broadcast %30 : vector<16x1xi32> to vector<16x3xi32>
    %32 = arith.cmpi eq, %8, %31 : vector<16x3xi32>
    %33 = arith.ori %20, %32 : vector<16x3xi1>
    %cst_9 = arith.constant -1.000000e+30 : f32
    %34 = vector.broadcast %cst_9 : f32 to vector<16x3xf32>
    %35 = arith.select %33, %7, %34 : vector<16x3xi1>, vector<16x3xf32>
    %cst_10 = arith.constant dense<0xFF800000> : vector<16xf32>
    %36 = vector.multi_reduction <maximumf>, %35, %cst_10 [1] : vector<16x3xf32> to vector<16xf32>
    %37 = vector.shape_cast %36 : vector<16xf32> to vector<16x1xf32>
    %38 = vector.broadcast %37 : vector<16x1xf32> to vector<16x3xf32>
    %39 = arith.subf %35, %38 : vector<16x3xf32>
    %40 = math.exp %39 : vector<16x3xf32>
    %cst_11 = arith.constant 0.000000e+00 : f32
    %41 = vector.broadcast %cst_11 : f32 to vector<16x3xf32>
    %42 = arith.select %33, %40, %41 : vector<16x3xi1>, vector<16x3xf32>
    %cst_12 = arith.constant dense<0.000000e+00> : vector<16xf32>
    %43 = vector.multi_reduction <add>, %42, %cst_12 [1] : vector<16x3xf32> to vector<16xf32>
    %44 = vector.shape_cast %43 : vector<16xf32> to vector<16x1xf32>
    %45 = tpu.reciprocal %44 {approx = true} : vector<16x1xf32> -> vector<16x1xf32>
    %46 = vector.broadcast %45 : vector<16x1xf32> to vector<16x3xf32>
    %47 = arith.mulf %42, %46 : vector<16x3xf32>
    %c0_13 = arith.constant 0 : index
    %c0_14 = arith.constant 0 : index
    %48 = vector.load %arg4[%c0_13, %c0_14] : memref<3x47xf32, #tpu.memory_space<vmem>>, vector<3x47xf32>
    %cst_15 = arith.constant dense<0.000000e+00> : vector<16x47xf32>
    %49 = tpu.matmul %47, %48, %cst_15 {dimension_numbers = #tpu.dot_dimension_numbers<[1], [0], [0], [1], [0, 0, 1, 1], [], []>} : vector<16x3xf32>, vector<3x47xf32>, vector<16x47xf32> -> vector<16x47xf32>
    %c0_16 = arith.constant 0 : index
    %c0_17 = arith.constant 0 : index
    %50 = vector.load %arg5[%c0_16, %c0_17] : memref<1x47xf32, #tpu.memory_space<vmem>>, vector<1x47xf32>
    %51 = vector.broadcast %50 : vector<1x47xf32> to vector<16x47xf32>
    %52 = arith.addf %49, %51 : vector<16x47xf32>
    %53 = arith.truncf %5 : vector<16x32xf32> to vector<16x32xbf16>
    %c0_18 = arith.constant 0 : index
    %c0_19 = arith.constant 0 : index
    %54 = vector.load %arg3[%c0_18, %c0_19] : memref<32x47xbf16, #tpu.memory_space<vmem>>, vector<32x47xbf16>
    %cst_20 = arith.constant dense<0.000000e+00> : vector<16x47xf32>
    %55 = tpu.matmul %53, %54, %cst_20 {dimension_numbers = #tpu.dot_dimension_numbers<[1], [0], [0], [1], [0, 0, 1, 1], [], []>} : vector<16x32xbf16>, vector<32x47xbf16>, vector<16x47xf32> -> vector<16x47xf32>
    %56 = arith.mulf %55, %52 : vector<16x47xf32>
    %57 = arith.truncf %56 : vector<16x47xf32> to vector<16x47xbf16>
    %c0_21 = arith.constant 0 : index
    %c0_22 = arith.constant 0 : index
    %58 = vector.load %arg6[%c0_21, %c0_22] : memref<47x32xbf16, #tpu.memory_space<vmem>>, vector<47x32xbf16>
    %cst_23 = arith.constant dense<0.000000e+00> : vector<16x32xf32>
    %59 = tpu.matmul %57, %58, %cst_23 {dimension_numbers = #tpu.dot_dimension_numbers<[1], [0], [0], [1], [0, 0, 1, 1], [], []>} : vector<16x47xbf16>, vector<47x32xbf16>, vector<16x32xf32> -> vector<16x32xf32>
    %c0_24 = arith.constant 0 : index
    %c0_25 = arith.constant 0 : index
    %60 = vector.load %arg7[%c0_24, %c0_25] : memref<1x32xf32, #tpu.memory_space<vmem>>, vector<1x32xf32>
    %61 = vector.broadcast %60 : vector<1x32xf32> to vector<16x32xf32>
    %62 = arith.addf %59, %61 : vector<16x32xf32>
    %63 = vector.extract_strided_slice %62 {offsets = [0, 0], sizes = [4, 32], strides = [1, 1]} : vector<16x32xf32> to vector<4x32xf32>
    %64 = vector.extract_strided_slice %62 {offsets = [4, 0], sizes = [4, 32], strides = [1, 1]} : vector<16x32xf32> to vector<4x32xf32>
    %65 = vector.extract_strided_slice %62 {offsets = [8, 0], sizes = [4, 32], strides = [1, 1]} : vector<16x32xf32> to vector<4x32xf32>
    %66 = vector.extract_strided_slice %62 {offsets = [12, 0], sizes = [4, 32], strides = [1, 1]} : vector<16x32xf32> to vector<4x32xf32>
    %67 = tpu.concatenate %63, %64, %65, %66 in 1 : vector<4x32xf32>, vector<4x32xf32>, vector<4x32xf32>, vector<4x32xf32> -> vector<4x128xf32>
    %c0_26 = arith.constant 0 : index
    %c0_27 = arith.constant 0 : index
    %68 = vector.load %arg8[%c0_26, %c0_27] : memref<4x128xf32, #tpu.memory_space<vmem>>, vector<4x128xf32>
    tpu.vector_store %arg8[%c0_26, %c0_27], %67 {strides = array<i32>} : memref<4x128xf32, #tpu.memory_space<vmem>>, vector<4x128xf32>,
    return
  }
  func.func @transform_0(%arg0: i32) -> (i32, i32) {
    %c0_i32 = arith.constant 0 : i32
    %c0_i32_0 = arith.constant 0 : i32
    return %arg0, %c0_i32 : i32, i32
  }
  func.func @transform_1(%arg0: i32) -> (i32, i32) {
    %c0_i32 = arith.constant 0 : i32
    %c0_i32_0 = arith.constant 0 : i32
    %c0_i32_1 = arith.constant 0 : i32
    return %c0_i32, %c0_i32_0 : i32, i32
  }
  func.func @transform_2(%arg0: i32) -> (i32, i32) {
    %c0_i32 = arith.constant 0 : i32
    %c0_i32_0 = arith.constant 0 : i32
    %c0_i32_1 = arith.constant 0 : i32
    return %c0_i32, %c0_i32_0 : i32, i32
  }
  func.func @transform_3(%arg0: i32) -> (i32, i32) {
    %c0_i32 = arith.constant 0 : i32
    %c0_i32_0 = arith.constant 0 : i32
    %c0_i32_1 = arith.constant 0 : i32
    return %c0_i32, %c0_i32_0 : i32, i32
  }
  func.func @transform_4(%arg0: i32) -> (i32, i32) {
    %c0_i32 = arith.constant 0 : i32
    %c0_i32_0 = arith.constant 0 : i32
    %c0_i32_1 = arith.constant 0 : i32
    return %c0_i32, %c0_i32_0 : i32, i32
  }
  func.func @transform_5(%arg0: i32) -> (i32, i32) {
    %c0_i32 = arith.constant 0 : i32
    %c0_i32_0 = arith.constant 0 : i32
    %c0_i32_1 = arith.constant 0 : i32
    return %c0_i32, %c0_i32_0 : i32, i32
  }
  func.func @transform_6(%arg0: i32) -> (i32, i32) {
    %c0_i32 = arith.constant 0 : i32
    %c0_i32_0 = arith.constant 0 : i32
    %c0_i32_1 = arith.constant 0 : i32
    return %c0_i32, %c0_i32_0 : i32, i32
  }
  func.func @transform_7(%arg0: i32) -> (i32, i32) {
    %c0_i32 = arith.constant 0 : i32
    %c0_i32_0 = arith.constant 0 : i32
    return %arg0, %c0_i32 : i32, i32
  }
}

</mosaic_0001>

<llo_original>
// kernel: moe_forward.1
$region0: #{moe_forward.1}
  #allocation0 [shape = 'u32[]', space=smem, size = 0x4, offset = 0x4, fixed_abs, tag = 'smem constant byte address 0x4 - core index']
  #allocation1 [shape = 'u32[144,128]{1,0:T(1,128)}', space=vmem, size = 0x12000, scoped, tag = 'internal scratch']
  %s0 = inlined_call_operand.vmem [shape: f32[4,128], index: 0, kind: input, shape index: {}]
  %s1 = inlined_call_operand.vmem [shape: f32[32,3], index: 1, kind: input, shape index: {}]
  %s2 = inlined_call_operand.vmem [shape: bf16[32,47], index: 2, kind: input, shape index: {}]
  %s3 = inlined_call_operand.vmem [shape: f32[3,47], index: 3, kind: input, shape index: {}]
  %s4 = inlined_call_operand.vmem [shape: f32[1,47], index: 4, kind: input, shape index: {}]
  %s5 = inlined_call_operand.vmem [shape: bf16[47,32], index: 5, kind: input, shape index: {}]
  %s6 = inlined_call_operand.vmem [shape: f32[1,32], index: 6, kind: input, shape index: {}]
  %s7 = inlined_call_operand.vmem [shape: f32[4,128], index: 7, kind: output, shape index: {}]
  %s8 = sld [smem:[#allocation0]]
  $region38: #{moe_forward.1} parent=0
    _
  %s10 = ssub.s32 1, %s8
  %s11 = scalar_select 0, %s10, %s8
  // Predicated region
  $region2: #{moe_forward.1} parent=0 // pred_check
    _
  $region3: #{moe_forward.1} parent=0 // pred_check_branch
    %13 = sbr.rel (0) target = $region5
  $region4: #{moe_forward.1} parent=0 // pred_region
    _
  $region5: #{moe_forward.1} parent=0 // pred_fallthru
    _
  // Predicated region
  $region6: #{moe_forward.1} parent=0 // pred_check
    _
  $region7: #{moe_forward.1} parent=0 // pred_check_branch
    %15 = sbr.rel (0) target = $region9
  $region8: #{moe_forward.1} parent=0 // pred_region
    _
  $region9: #{moe_forward.1} parent=0 // pred_fallthru
    _
  // Predicated region
  $region10: #{moe_forward.1} parent=0 // pred_check
    _
  $region11: #{moe_forward.1} parent=0 // pred_check_branch
    %17 = sbr.rel (0) target = $region13
  $region12: #{moe_forward.1} parent=0 // pred_region
    _
  $region13: #{moe_forward.1} parent=0 // pred_fallthru
    _
  // Predicated region
  $region14: #{moe_forward.1} parent=0 // pred_check
    _
  $region15: #{moe_forward.1} parent=0 // pred_check_branch
    %19 = sbr.rel (0) target = $region17
  $region16: #{moe_forward.1} parent=0 // pred_region
    _
  $region17: #{moe_forward.1} parent=0 // pred_fallthru
    _
  // Predicated region
  $region18: #{moe_forward.1} parent=0 // pred_check
    _
  $region19: #{moe_forward.1} parent=0 // pred_check_branch
    %21 = sbr.rel (0) target = $region21
  $region20: #{moe_forward.1} parent=0 // pred_region
    _
  $region21: #{moe_forward.1} parent=0 // pred_fallthru
    _
  // Predicated region
  $region22: #{moe_forward.1} parent=0 // pred_check
    _
  $region23: #{moe_forward.1} parent=0 // pred_check_branch
    %23 = sbr.rel (0) target = $region25
  $region24: #{moe_forward.1} parent=0 // pred_region
    _
  $region25: #{moe_forward.1} parent=0 // pred_fallthru
    _
  // Predicated region
  $region26: #{moe_forward.1} parent=0 // pred_check
    _
  $region27: #{moe_forward.1} parent=0 // pred_check_branch
    %25 = sbr.rel (0) target = $region29
  $region28: #{moe_forward.1} parent=0 // pred_region
    _
  $region29: #{moe_forward.1} parent=0 // pred_fallthru
    _
  %v27 = vld [vmem:[%s0] sm:$0xf]
  %v29 = vrot.slane %v27, 4
  %30 = vrot.lane.b32.xlu0 %v29, 96
  %v31 = vpop.permute.xlu0 %30
  %33 = vrot.lane.b32.xlu0 %v27, 64
  %v34 = vpop.permute.xlu0 %33
  %36 = vrot.lane.b32.xlu0 %v29, 32
  %v37 = vpop.permute.xlu0 %36
  %vm39 = vcmask 1043456
  %v40 = vsel %vm39, %v27, %v31
  %v41 = vsel %vm39, %v34, %v37
  %v42 = vld [vmem:[%s1] sm:$0xff]
  %v43 = vld [vmem:[%s1 + $0x8] sm:$0xff]
  %v44 = vld [vmem:[%s1 + $0x10] sm:$0xff]
  %v45 = vld [vmem:[%s1 + $0x18] sm:$0xff]
  %vm46 = vcmask 261120
  %v48 = vsel %vm46, %v40, 0
  %v51 = vsel %vm46, %v41, 0
  %53 = vmatprep.subr.mxu0 0.0
  %54 = vmatpush1.msra.mxu0 %v42
  %55 = vmatprep.subr.mxu0 0.0
  %56 = vmatpush1.msra.mxu0 %v43
  %57 = vmatprep.subr.mxu0 0.0
  %58 = vmatpush1.msra.mxu0 %v44
  %59 = vmatprep.subr.mxu0 0.0
  %60 = vmatpush1.msra.mxu0 %v45
  %61 = vmatprep.subr.mxu0 0.0
  %62 = vmatpush1.msra.mxu0 0.0
  %63 = vmatprep.subr.mxu0 0.0
  %64 = vmatpush1.msra.mxu0 0.0
  %65 = vmatprep.subr.mxu0 0.0
  %66 = vmatpush1.msra.mxu0 0.0
  %67 = vmatprep.subr.mxu0 0.0
  %68 = vmatpush1.msra.mxu0 0.0
  %69 = vmatprep.subr.mxu0 0.0
  %70 = vmatpush1.msra.mxu0 0.0
  %71 = vmatprep.subr.mxu0 0.0
  %72 = vmatpush1.msra.mxu0 0.0
  %73 = vmatprep.subr.mxu0 0.0
  %74 = vmatpush1.msra.mxu0 0.0
  %75 = vmatprep.subr.mxu0 0.0
  %76 = vmatpush1.msra.mxu0 0.0
  %77 = vmatprep.subr.mxu0 0.0
  %78 = vmatpush1.msra.mxu0 0.0
  %79 = vmatprep.subr.mxu0 0.0
  %80 = vmatpush1.msra.mxu0 0.0
  %81 = vmatprep.subr.mxu0 0.0
  %82 = vmatpush1.msra.mxu0 0.0
  %83 = vmatprep.subr.mxu0 0.0
  %84 = vmatpush1.msra.mxu0 0.0
  %85 = vmatprep.subr.mxu0 0.0
  %86 = vmatpush1.msra.mxu0 0.0
  %87 = vmatprep.subr.mxu0 0.0
  %88 = vmatpush1.msra.mxu0 0.0
  %89 = vmatprep.subr.mxu0 0.0
  %90 = vmatpush1.msra.mxu0 0.0
  %91 = vmatprep.subr.mxu0 0.0
  %92 = vmatpush1.msra.mxu0 0.0
  %93 = vmatprep.subr.mxu0 0.0
  %94 = vmatpush1.msra.mxu0 0.0
  %95 = vmatprep.subr.mxu0 0.0
  %96 = vmatpush1.msra.mxu0 0.0
  %97 = vmatprep.subr.mxu0 0.0
  %98 = vmatpush1.msra.mxu0 0.0
  %99 = vmatprep.subr.mxu0 0.0
  %100 = vmatpush1.msra.mxu0 0.0
  %101 = vmatprep.subr.mxu0 0.0
  %102 = vmatpush1.msra.mxu0 0.0
  %103 = vmatprep.subr.mxu0 0.0
  %104 = vmatpush1.msra.mxu0 0.0
  %105 = vmatprep.subr.mxu0 0.0
  %106 = vmatpush1.msra.mxu0 0.0
  %107 = vmatprep.subr.mxu0 0.0
  %108 = vmatpush1.msra.mxu0 0.0
  %109 = vmatprep.subr.mxu0 0.0
  %110 = vmatpush1.msra.mxu0 0.0
  %111 = vmatprep.subr.mxu0 0.0
  %112 = vmatpush1.msra.mxu0 0.0
  %113 = vmatprep.subr.mxu0 0.0
  %114 = vmatpush1.msra.mxu0 0.0
  %115 = vmatprep.subr.mxu0 0.0
  %116 = vmatpush1.msra.mxu0 0.0
  %117 = vmatprep.mubr.f32.mxu0 0.0
  %118 = vmatmul.mubr.f32.gmra.mrb[0].mxu0 %v48
  %v119 = vpop.f32.mrb[0].mxu0
  %v120 = vadd.f32 0.0, %v119
  %v121 = vpop.f32.mrb[0].mxu0
  %122 = vmatprep.mubr.f32.mxu0 0.0
  %123 = vmatmul.mubr.f32.gmra.mrb[0].mxu0 %v51
  %v124 = vpop.f32.mrb[0].mxu0
  %v125 = vadd.f32 0.0, %v124
  %v126 = vpop.f32.mrb[0].mxu0
  %127 = vdwg.mxu0
  %v128 = vlaneseq
  %v129 = vand.u32 %v128, 127
  %vm130 = vcmask 23552
  %v131 = vsel %vm130, %v120, -inf
  %132 = vmax.xlane.f32.xlu0 %v131
  %v133 = vpop.xlane.xlu0 %132
  %v134 = vsel %vm130, %v125, -inf
  %135 = vmax.xlane.f32.xlu0 %v134
  %v136 = vpop.xlane.xlu0 %135
  %vm137 = vcmp.eq.f32.partialorder %v120, %v133
  %vm138 = vcmp.eq.f32.partialorder %v125, %v136
  %v139 = vsel %vm137, %v129, 3
  %v140 = vsel %vm138, %v129, 3
  %v141 = vsel %vm130, %v139, 2147483647
  %v142 = vand.u32 %v141, 65535
  %v143 = vshra.s32 %v141, 16
  %v144 = vcvt.s32.f32 %v142
  %v145 = vcvt.s32.f32 %v143
  %146 = vmin.xlane.f32.xlu0 %v145
  %v147 = vpop.xlane.xlu0 %146
  %vm148 = vcmp.eq.f32.partialorder %v145, %v147
  %v149 = vsel %vm148, %v144, inf
  %150 = vmin.xlane.f32.xlu0 %v149
  %v151 = vpop.xlane.xlu0 %150
  %v152 = vcvt.f32.s32 %v151
  %v153 = vcvt.f32.s32 %v147
  %v154 = vshll.u32 %v153, 16
  %v155 = vadd.s32 %v154, %v152
  %v156 = vsel %vm130, %v140, 2147483647
  %v157 = vand.u32 %v156, 65535
  %v158 = vshra.s32 %v156, 16
  %v159 = vcvt.s32.f32 %v157
  %v160 = vcvt.s32.f32 %v158
  %161 = vmin.xlane.f32.xlu0 %v160
  %v162 = vpop.xlane.xlu0 %161
  %vm163 = vcmp.eq.f32.partialorder %v160, %v162
  %v164 = vsel %vm163, %v159, inf
  %165 = vmin.xlane.f32.xlu0 %v164
  %v166 = vpop.xlane.xlu0 %165
  %v167 = vcvt.f32.s32 %v166
  %v168 = vcvt.f32.s32 %v162
  %v169 = vshll.u32 %v168, 16
  %v170 = vadd.s32 %v169, %v167
  %vm171 = vcmp.eq.s32.totalorder %v129, %v155
  %vm172 = vcmp.eq.s32.totalorder %v129, %v170
  %v173 = vsel %vm171, -1e+30, %v120
  %v174 = vsel %vm172, -1e+30, %v125
  %v175 = vsel %vm130, %v173, -inf
  %176 = vmax.xlane.f32.xlu0 %v175
  %v177 = vpop.xlane.xlu0 %176
  %v178 = vsel %vm130, %v174, -inf
  %179 = vmax.xlane.f32.xlu0 %v178
  %v180 = vpop.xlane.xlu0 %179
  %vm181 = vcmp.eq.f32.partialorder %v173, %v177
  %vm182 = vcmp.eq.f32.partialorder %v174, %v180
  %v183 = vsel %vm181, %v129, 3
  %v184 = vsel %vm182, %v129, 3
  %v185 = vsel %vm130, %v183, 2147483647
  %v186 = vand.u32 %v185, 65535
  %v187 = vshra.s32 %v185, 16
  %v188 = vcvt.s32.f32 %v186
  %v189 = vcvt.s32.f32 %v187
  %190 = vmin.xlane.f32.xlu0 %v189
  %v191 = vpop.xlane.xlu0 %190
  %vm192 = vcmp.eq.f32.partialorder %v189, %v191
  %v193 = vsel %vm192, %v188, inf
  %194 = vmin.xlane.f32.xlu0 %v193
  %v195 = vpop.xlane.xlu0 %194
  %v196 = vcvt.f32.s32 %v195
  %v197 = vcvt.f32.s32 %v191
  %v198 = vshll.u32 %v197, 16
  %v199 = vadd.s32 %v198, %v196
  %v200 = vsel %vm130, %v184, 2147483647
  %v201 = vand.u32 %v200, 65535
  %v202 = vshra.s32 %v200, 16
  %v203 = vcvt.s32.f32 %v201
  %v204 = vcvt.s32.f32 %v202
  %205 = vmin.xlane.f32.xlu0 %v204
  %v206 = vpop.xlane.xlu0 %205
  %vm207 = vcmp.eq.f32.partialorder %v204, %v206
  %v208 = vsel %vm207, %v203, inf
  %209 = vmin.xlane.f32.xlu0 %v208
  %v210 = vpop.xlane.xlu0 %209
  %v211 = vcvt.f32.s32 %v210
  %v212 = vcvt.f32.s32 %v206
  %v213 = vshll.u32 %v212, 16
  %v214 = vadd.s32 %v213, %v211
  %vm215 = vcmp.eq.s32.totalorder %v129, %v199
  %vm216 = vcmp.eq.s32.totalorder %v129, %v214
  %vm217 = vmor %vm171, %vm215
  %vm218 = vmor %vm172, %vm216
  %v219 = vsel %vm217, %v120, -1e+30
  %v220 = vsel %vm218, %v125, -1e+30
  %v221 = vsel %vm130, %v219, -inf
  %222 = vmax.xlane.f32.xlu0 %v221
  %v223 = vpop.xlane.xlu0 %222
  %v224 = vsel %vm130, %v220, -inf
  %225 = vmax.xlane.f32.xlu0 %v224
  %v226 = vpop.xlane.xlu0 %225
  %v227 = vsub.f32 %v219, %v223
  %v228 = vsub.f32 %v220, %v226
  %v229 = vmul.f32 %v227, 1.442695
  %v230 = vpow.pop %v229
  %v231 = vmul.f32 %v228, 1.442695
  %v232 = vpow.pop %v231
  %v233 = vsel %vm217, %v230, 0.0
  %v234 = vsel %vm218, %v232, 0.0
  %v235 = vsel %vm130, %v233, 0.0
  %236 = vadd.xlane.f32.xlu0 %v235
  %v237 = vpop.xlane.xlu0 %236
  %v238 = vsel %vm130, %v234, 0.0
  %239 = vadd.xlane.f32.xlu0 %v238
  %v240 = vpop.xlane.xlu0 %239
  %v241 = vrcp.pop %v237
  %v242 = vrcp.pop %v240
  %v243 = vmul.f32 %v233, %v241
  %v244 = vmul.f32 %v234, %v242
  %v245 = vld [vmem:[%s3] sm:$0x7]
  %v246 = vld [vmem:[%s4] sm:$0x1]
  %v248 = vlaneseq
  %v249 = vshrl.u32 %v248, 7
  %v250 = vsub.s32 0, %v249
  %v251 = vrot.slane %v246, %v250
  %v254 = vsel %vm130, %v243, 0
  %v257 = vsel %vm130, %v244, 0
  %vm259 = vcmask 1042432
  %v261 = vsel %vm259, %v245, 0
  %263 = vmatprep.subr.mxu0 0.0
  %264 = vmatpush1.msra.mxu0 %v261
  %265 = vmatprep.subr.mxu0 0.0
  %266 = vmatpush1.msra.mxu0 0.0
  %267 = vmatprep.subr.mxu0 0.0
  %268 = vmatpush1.msra.mxu0 0.0
  %269 = vmatprep.subr.mxu0 0.0
  %270 = vmatpush1.msra.mxu0 0.0
  %271 = vmatprep.subr.mxu0 0.0
  %272 = vmatpush1.msra.mxu0 0.0
  %273 = vmatprep.subr.mxu0 0.0
  %274 = vmatpush1.msra.mxu0 0.0
  %275 = vmatprep.subr.mxu0 0.0
  %276 = vmatpush1.msra.mxu0 0.0
  %277 = vmatprep.subr.mxu0 0.0
  %278 = vmatpush1.msra.mxu0 0.0
  %279 = vmatprep.subr.mxu0 0.0
  %280 = vmatpush1.msra.mxu0 0.0
  %281 = vmatprep.subr.mxu0 0.0
  %282 = vmatpush1.msra.mxu0 0.0
  %283 = vmatprep.subr.mxu0 0.0
  %284 = vmatpush1.msra.mxu0 0.0
  %285 = vmatprep.subr.mxu0 0.0
  %286 = vmatpush1.msra.mxu0 0.0
  %287 = vmatprep.subr.mxu0 0.0
  %288 = vmatpush1.msra.mxu0 0.0
  %289 = vmatprep.subr.mxu0 0.0
  %290 = vmatpush1.msra.mxu0 0.0
  %291 = vmatprep.subr.mxu0 0.0
  %292 = vmatpush1.msra.mxu0 0.0
  %293 = vmatprep.subr.mxu0 0.0
  %294 = vmatpush1.msra.mxu0 0.0
  %295 = vmatprep.subr.mxu0 0.0
  %296 = vmatpush1.msra.mxu0 0.0
  %297 = vmatprep.subr.mxu0 0.0
  %298 = vmatpush1.msra.mxu0 0.0
  %299 = vmatprep.subr.mxu0 0.0
  %300 = vmatpush1.msra.mxu0 0.0
  %301 = vmatprep.subr.mxu0 0.0
  %302 = vmatpush1.msra.mxu0 0.0
  %303 = vmatprep.subr.mxu0 0.0
  %304 = vmatpush1.msra.mxu0 0.0
  %305 = vmatprep.subr.mxu0 0.0
  %306 = vmatpush1.msra.mxu0 0.0
  %307 = vmatprep.subr.mxu0 0.0
  %308 = vmatpush1.msra.mxu0 0.0
  %309 = vmatprep.subr.mxu0 0.0
  %310 = vmatpush1.msra.mxu0 0.0
  %311 = vmatprep.subr.mxu0 0.0
  %312 = vmatpush1.msra.mxu0 0.0
  %313 = vmatprep.subr.mxu0 0.0
  %314 = vmatpush1.msra.mxu0 0.0
  %315 = vmatprep.subr.mxu0 0.0
  %316 = vmatpush1.msra.mxu0 0.0
  %317 = vmatprep.subr.mxu0 0.0
  %318 = vmatpush1.msra.mxu0 0.0
  %319 = vmatprep.subr.mxu0 0.0
  %320 = vmatpush1.msra.mxu0 0.0
  %321 = vmatprep.subr.mxu0 0.0
  %322 = vmatpush1.msra.mxu0 0.0
  %323 = vmatprep.subr.mxu0 0.0
  %324 = vmatpush1.msra.mxu0 0.0
  %325 = vmatprep.subr.mxu0 0.0
  %326 = vmatpush1.msra.mxu0 0.0
  %327 = vmatprep.mubr.f32.mxu0 0.0
  %328 = vmatmul.mubr.f32.gmra.mrb[0].mxu0 %v254
  %v329 = vpop.f32.mrb[0].mxu0
  %v330 = vadd.f32 %v251, %v329
  %v331 = vpop.f32.mrb[0].mxu0
  %332 = vmatprep.mubr.f32.mxu0 0.0
  %333 = vmatmul.mubr.f32.gmra.mrb[0].mxu0 %v257
  %v334 = vpop.f32.mrb[0].mxu0
  %v335 = vadd.f32 %v251, %v334
  %v336 = vpop.f32.mrb[0].mxu0
  %337 = vdwg.mxu0
  %v338 = vpack.c.bf16 %v41, %v40
  %v339 = vld [vmem:[%s2] sm:$0xf]
  %v340 = vld [vmem:[%s2 + $0x4] sm:$0xf]
  %v341 = vld [vmem:[%s2 + $0x8] sm:$0xf]
  %v342 = vld [vmem:[%s2 + $0xc] sm:$0xf]
  %v347 = vunpack.c.l.b16 %v339
  %v348 = vunpack.c.l.b16 %v340
  %v349 = vunpack.c.l.b16 %v341
  %v350 = vunpack.c.l.b16 %v342
  %v351 = vpack.c.b16 %v348, %v347
  %v352 = vpack.c.b16 %v350, %v349
  %v356 = vsel %vm46, %v338, 0
  %358 = vmatprep.subr.bf16.mxu0 0
  %359 = vmatpush1.bf16.msra.mxu0 %v351
  %360 = vmatprep.subr.bf16.mxu0 0
  %361 = vmatpush1.bf16.msra.mxu0 %v352
  %362 = vmatprep.subr.bf16.mxu0 0
  %363 = vmatpush1.bf16.msra.mxu0 0
  %364 = vmatprep.subr.bf16.mxu0 0
  %365 = vmatpush1.bf16.msra.mxu0 0
  %366 = vmatprep.subr.bf16.mxu0 0
  %367 = vmatpush1.bf16.msra.mxu0 0
  %368 = vmatprep.subr.bf16.mxu0 0
  %369 = vmatpush1.bf16.msra.mxu0 0
  %370 = vmatprep.subr.bf16.mxu0 0
  %371 = vmatpush1.bf16.msra.mxu0 0
  %372 = vmatprep.subr.bf16.mxu0 0
  %373 = vmatpush1.bf16.msra.mxu0 0
  %374 = vmatprep.subr.bf16.mxu0 0
  %375 = vmatpush1.bf16.msra.mxu0 0
  %376 = vmatprep.subr.bf16.mxu0 0
  %377 = vmatpush1.bf16.msra.mxu0 0
  %378 = vmatprep.subr.bf16.mxu0 0
  %379 = vmatpush1.bf16.msra.mxu0 0
  %380 = vmatprep.subr.bf16.mxu0 0
  %381 = vmatpush1.bf16.msra.mxu0 0
  %382 = vmatprep.subr.bf16.mxu0 0
  %383 = vmatpush1.bf16.msra.mxu0 0
  %384 = vmatprep.subr.bf16.mxu0 0
  %385 = vmatpush1.bf16.msra.mxu0 0
  %386 = vmatprep.subr.bf16.mxu0 0
  %387 = vmatpush1.bf16.msra.mxu0 0
  %388 = vmatprep.subr.bf16.mxu0 0
  %389 = vmatpush1.bf16.msra.mxu0 0
  %390 = vmatprep.mubr.bf16.mxu0 0
  %391 = vmatmul.mubr.bf16.gmra.mrb[0].mxu0 %v356
  %v392 = vpop.f32.mrb[0].mxu0
  %v393 = vadd.f32 0.0, %v392
  %v394 = vpop.f32.mrb[0].mxu0
  %v395 = vpop.f32.mrb[0].mxu0
  %v396 = vadd.f32 0.0, %v395
  %v397 = vpop.f32.mrb[0].mxu0
  %398 = vdwg.mxu0
  %v399 = vmul.f32 %v393, %v330
  %v400 = vmul.f32 %v396, %v335
  %v401 = vpack.c.bf16 %v400, %v399
  %v402 = vld [vmem:[%s5] sm:$0xf]
  %v403 = vld [vmem:[%s5 + $0x4] sm:$0xf]
  %v404 = vld [vmem:[%s5 + $0x8] sm:$0xf]
  %v405 = vld [vmem:[%s5 + $0xc] sm:$0xf]
  %v406 = vld [vmem:[%s5 + $0x10] sm:$0xf]
  %v407 = vld [vmem:[%s5 + $0x14] sm:$0xf]
  %v408 = vld [vmem:[%s6] sm:$0x1]
  %v410 = vlaneseq
  %v411 = vshrl.u32 %v410, 7
  %v412 = vsub.s32 0, %v411
  %v413 = vrot.slane %v408, %v412
  %v421 = vunpack.c.l.b16 %v402
  %v422 = vunpack.c.l.b16 %v403
  %v423 = vunpack.c.l.b16 %v404
  %v424 = vunpack.c.l.b16 %v405
  %v425 = vunpack.c.l.b16 %v406
  %v426 = vunpack.c.l.b16 %v407
  %v427 = vpack.c.b16 %v422, %v421
  %v428 = vpack.c.b16 %v424, %v423
  %v429 = vpack.c.b16 %v426, %v425
  %vm432 = vcmask 384000
  %v434 = vsel %vm432, %v401, 0
  %vm436 = vcmask 1046528
  %vm437 = vcmask 1047552
  %v438 = vsel %vm436, 4294967295, 65535
  %v439 = vsel %vm437, %v438, 0
  %v441 = vand.u32 %v429, %v439
  %443 = vmatprep.subr.bf16.mxu0 0
  %444 = vmatpush1.bf16.msra.mxu0 %v427
  %445 = vmatprep.subr.bf16.mxu0 0
  %446 = vmatpush1.bf16.msra.mxu0 %v428
  %447 = vmatprep.subr.bf16.mxu0 0
  %448 = vmatpush1.bf16.msra.mxu0 %v441
  %449 = vmatprep.subr.bf16.mxu0 0
  %450 = vmatpush1.bf16.msra.mxu0 0
  %451 = vmatprep.subr.bf16.mxu0 0
  %452 = vmatpush1.bf16.msra.mxu0 0
  %453 = vmatprep.subr.bf16.mxu0 0
  %454 = vmatpush1.bf16.msra.mxu0 0
  %455 = vmatprep.subr.bf16.mxu0 0
  %456 = vmatpush1.bf16.msra.mxu0 0
  %457 = vmatprep.subr.bf16.mxu0 0
  %458 = vmatpush1.bf16.msra.mxu0 0
  %459 = vmatprep.subr.bf16.mxu0 0
  %460 = vmatpush1.bf16.msra.mxu0 0
  %461 = vmatprep.subr.bf16.mxu0 0
  %462 = vmatpush1.bf16.msra.mxu0 0
  %463 = vmatprep.subr.bf16.mxu0 0
  %464 = vmatpush1.bf16.msra.mxu0 0
  %465 = vmatprep.subr.bf16.mxu0 0
  %466 = vmatpush1.bf16.msra.mxu0 0
  %467 = vmatprep.subr.bf16.mxu0 0
  %468 = vmatpush1.bf16.msra.mxu0 0
  %469 = vmatprep.subr.bf16.mxu0 0
  %470 = vmatpush1.bf16.msra.mxu0 0
  %471 = vmatprep.subr.bf16.mxu0 0
  %472 = vmatpush1.bf16.msra.mxu0 0
  %473 = vmatprep.subr.bf16.mxu0 0
  %474 = vmatpush1.bf16.msra.mxu0 0
  %475 = vmatprep.mubr.bf16.mxu0 0
  %476 = vmatmul.mubr.bf16.gmra.mrb[0].mxu0 %v434
  %v477 = vpop.f32.mrb[0].mxu0
  %v478 = vadd.f32 %v413, %v477
  %v479 = vpop.f32.mrb[0].mxu0
  %v480 = vpop.f32.mrb[0].mxu0
  %v481 = vadd.f32 %v413, %v480
  %v482 = vpop.f32.mrb[0].mxu0
  %483 = vdwg.mxu0
  %v485 = vrot.slane %v478, 4
  %486 = vrot.lane.b32.xlu0 %v485, 32
  %v487 = vpop.permute.xlu0 %486
  %490 = vrot.lane.b32.xlu0 %v481, 64
  %v491 = vpop.permute.xlu0 %490
  %v493 = vrot.slane %v481, 4
  %494 = vrot.lane.b32.xlu0 %v493, 96
  %v495 = vpop.permute.xlu0 %494
  %v497 = vsel %vm46, %v478, %v487
  %vm498 = vcmask 523264
  %v499 = vsel %vm498, %v497, %v491
  %vm500 = vcmask 785408
  %v501 = vsel %vm500, %v499, %v495
  %502 = vst [vmem:[%s7] sm:$0xf] %v501
  // Predicated region
  $region30: #{moe_forward.1} parent=0 // pred_check
    _
  $region31: #{moe_forward.1} parent=0 // pred_check_branch
    %504 = sbr.rel (0) target = $region33
  $region32: #{moe_forward.1} parent=0 // pred_region
    _
  $region33: #{moe_forward.1} parent=0 // pred_fallthru
    _
  // Predicated region
  $region34: #{moe_forward.1} parent=0 // pred_check
    _
  $region35: #{moe_forward.1} parent=0 // pred_check_branch
    %506 = sbr.rel (0) target = $region37
  $region36: #{moe_forward.1} parent=0 // pred_region
    _
  $region37: #{moe_forward.1} parent=0 // pred_fallthru
    _

</llo_original>
